<compile_context>
chip_gen: v6e
topology: v6e:2x2x1
jax: 0.10.0
libtpu: 0.0.40
codegen_flags: <defaults>
</compile_context>

<pallas_src>
import functools

import jax
import jax.numpy as jnp
import numpy as np
from jax import lax
from jax.experimental import pallas as pl
from jax.experimental.pallas import tpu as pltpu


def _vmem_budget():
    """(bytes per pipelined input buffer, vmem_limit_bytes) per TPU generation."""
    per_buf, limit = 8 * 1024 * 1024, 32 * 1024 * 1024      # v7x-safe default
    try:
        cap = getattr(pltpu.get_tpu_info(), "vmem_capacity_bytes", 0)
        if cap and cap >= 100 * 1024 * 1024:                 # v5e / v6e: 128 MiB VMEM
            per_buf, limit = 16 * 1024 * 1024, 64 * 1024 * 1024
    except Exception:
        pass
    return per_buf, limit


# ---------------------------------------------------------------------------
# max / mean pooling: grid = (batch tiles, D tiles, time tiles),
# f32 VMEM accumulator, segment-window time-tile skipping.
# ---------------------------------------------------------------------------
def _reduce_pool_kernel(fb_ref, nblk_ref, starts_ref, ends_ref, x_ref, out_ref,
                        acc_ref, *, pooling, tile_t):
    i = pl.program_id(0)
    kt = pl.program_id(2)
    nt = pl.num_programs(2)

    @pl.when(kt == 0)
    def _init():
        if pooling == 'max':
            acc_ref[...] = jnp.full(acc_ref.shape, -jnp.inf, dtype=acc_ref.dtype)
        else:
            acc_ref[...] = jnp.zeros(acc_ref.shape, dtype=acc_ref.dtype)

    # Only accumulate time tiles inside this batch tile's segment window; tiles
    # beyond it repeat the previous block index (no DMA) and are skipped here.
    @pl.when(kt < nblk_ref[i])
    def _accum():
        s = starts_ref[...]                        # (Bt, 1) int32
        e = ends_ref[...]                          # (Bt, 1) int32
        x = x_ref[...].astype(jnp.float32)         # (Bt, tile_t, tile_d)
        bt_, tt_, _ = x.shape
        blk = fb_ref[i] + kt                       # actual fetched time block
        # Time mask with a singleton lane dim; broadcasts over the feature dim.
        # Grid-padded / boundary rows have t_idx >= T >= end -> masked out.
        t_idx = blk * tile_t + lax.broadcasted_iota(jnp.int32, (bt_, tt_, 1), 1)
        in_seg = (t_idx >= s[:, :, None]) & (t_idx < e[:, :, None])
        if pooling == 'max':
            tile_max = jnp.max(jnp.where(in_seg, x, -jnp.inf), axis=1)   # (Bt, td)
            acc_ref[...] = jnp.maximum(acc_ref[...], tile_max)
        else:  # 'mean' -> running sum in f32
            acc_ref[...] = acc_ref[...] + jnp.sum(jnp.where(in_seg, x, 0.0), axis=1)

    @pl.when(kt == nt - 1)
    def _finalize():
        s = starts_ref[...]
        e = ends_ref[...]
        nonempty = e > s                                                  # (Bt, 1)
        if pooling == 'max':
            res = jnp.where(nonempty, acc_ref[...], 0.0)
        else:
            cnt = jnp.maximum(e - s, 1).astype(jnp.float32)
            res = jnp.where(nonempty, acc_ref[...] / cnt, 0.0)
        out_ref[...] = res.astype(out_ref.dtype)


def _pooled_reduce(output, starts, ends, pooling, max_tile_t=None):
    B, T, D = output.shape
    itemsize = output.dtype.itemsize
    per_buf, vmem_limit = _vmem_budget()

    # Batch tile: 8 sublane-aligned rows; grow only if B keeps >= 2 parallel tiles
    # and the fatter block still fits the per-buffer budget.
    bt = 8
    for cand in (16, 32):
        if B >= 2 * cand and cand * T * D * itemsize <= per_buf:
            bt = cand
    nb = pl.cdiv(B, bt)
    b_pad = nb * bt

    # Feature split only when a single batch tile would leave the second
    # TensorCore (v7x) idle; blocks stay a multiple of 128 lanes.
    nd = 2 if (nb < 2 and D >= 256 and (D // 2) % 128 == 0) else 1
    tile_d = D // nd

    # Time tile from the VMEM budget (double-buffered input stays within budget).
    budget_rows = max(8, (per_buf // (bt * tile_d * itemsize)) // 8 * 8)
    cap = budget_rows if max_tile_t is None else min(max_tile_t, budget_rows)
    tile_t = T if T <= cap else max(8, (cap // 8) * 8)
    nt = pl.cdiv(T, tile_t)

    # Pad only the tiny starts/ends vectors (padded rows become empty segments).
    starts_i = starts.astype(jnp.int32)
    ends_i = ends.astype(jnp.int32)
    pad = b_pad - B
    if pad:
        starts_i = jnp.pad(starts_i, (0, pad))
        ends_i = jnp.pad(ends_i, (0, pad))
    starts2d = starts_i.reshape(b_pad, 1)
    ends2d = ends_i.reshape(b_pad, 1)

    # Per-batch-tile time-block window (scalar prefetch -> data-dependent index_map).
    valid = ends_i > starts_i
    sblk = jnp.where(valid, starts_i // tile_t, nt - 1).reshape(nb, bt)
    eblk = jnp.where(valid, jnp.maximum(ends_i - 1, 0) // tile_t, 0).reshape(nb, bt)
    fb = jnp.clip(jnp.min(sblk, axis=1), 0, nt - 1).astype(jnp.int32)
    lb = jnp.clip(jnp.max(eblk, axis=1), 0, nt - 1).astype(jnp.int32)
    nblk = jnp.maximum(lb - fb + 1, 1).astype(jnp.int32)

    kernel = functools.partial(_reduce_pool_kernel, pooling=pooling, tile_t=tile_t)
    return pl.pallas_call(
        kernel,
        out_shape=jax.ShapeDtypeStruct((B, D), output.dtype),
        grid_spec=pltpu.PrefetchScalarGridSpec(
            num_scalar_prefetch=2,                       # fb, nblk -> SMEM
            grid=(nb, nd, nt),
            in_specs=[
                pl.BlockSpec((bt, 1), lambda i, j, k, fb, nblk: (i, 0)),
                pl.BlockSpec((bt, 1), lambda i, j, k, fb, nblk: (i, 0)),
                pl.BlockSpec(
                    (bt, tile_t, tile_d),
                    lambda i, j, k, fb, nblk:
                        (i, fb[i] + jnp.minimum(k, nblk[i] - 1), j)),
            ],
            out_specs=pl.BlockSpec((bt, tile_d), lambda i, j, k, fb, nblk: (i, j)),
            scratch_shapes=[pltpu.VMEM((bt, tile_d), jnp.float32)],
        ),
        compiler_params=pltpu.CompilerParams(
            dimension_semantics=("parallel", "parallel", "arbitrary"),
            vmem_limit_bytes=vmem_limit),
        cost_estimate=pl.CostEstimate(
            flops=2 * B * T * D,
            transcendentals=0,
            bytes_accessed=B * T * D * itemsize + B * D * itemsize + 2 * b_pad * 4),
    )(fb, nblk, starts2d, ends2d, output)


# ---------------------------------------------------------------------------
# 'last' pooling: grid = (batch tiles, 8 rows); data-dependent 8-row time-window
# fetch per row, direct dynamic sublane read, (8, D) resident output block.
# ---------------------------------------------------------------------------
def _last_pool_kernel(*refs, seq_len, time_block, dim_hidden, bidirectional,
                      batch_tile):
    if bidirectional:
        ends_ref, fwd_ref, bwd_ref, out_ref = refs
    else:
        ends_ref, fwd_ref, out_ref = refs

    i = pl.program_id(0)
    r = pl.program_id(1)
    b = i * batch_tile + r
    # end == 0 wraps to T-1, matching torch's output[i, -1].
    idx = (ends_ref[b] + seq_len - 1) % seq_len
    local = idx % time_block                       # row within the fetched window
    row = fwd_ref[0, pl.ds(local, 1), :]           # (1, D) direct dynamic read
    if bidirectional:
        bwd_row = bwd_ref[0, 0:1, :]               # t == 0 row, (1, D)
        col = lax.broadcasted_iota(jnp.int32, row.shape, 1)
        row = jnp.where(col < dim_hidden, row, bwd_row)
    out_ref[pl.ds(r, 1), :] = row                  # staged into resident (8, D) block


def _pooled_last(output, ends, dim_hidden, bidirectional):
    B, T, D = output.shape
    itemsize = output.dtype.itemsize
    bt = 8
    nb = pl.cdiv(B, bt)
    b_pad = nb * bt
    tb = min(8, T)                                 # 8-row sublane fetch window

    ends_i = ends.astype(jnp.int32)
    if b_pad != B:
        ends_i = jnp.pad(ends_i, (0, b_pad - B), constant_values=1)

    def fwd_map(i, r, e_ref):
        b = i * bt + r
        idx = (e_ref[b] + T - 1) % T
        return (jnp.minimum(b, B - 1), idx // tb, 0)   # clamp keeps DMA in bounds

    in_specs = [pl.BlockSpec((1, tb, D), fwd_map)]
    inputs = [output]
    if bidirectional:
        in_specs.append(pl.BlockSpec(
            (1, tb, D), lambda i, r, e_ref: (jnp.minimum(i * bt + r, B - 1), 0, 0)))
        inputs.append(output)

    kernel = functools.partial(_last_pool_kernel, seq_len=T, time_block=tb,
                               dim_hidden=dim_hidden, bidirectional=bidirectional,
                               batch_tile=bt)
    n_in = len(inputs)
    return pl.pallas_call(
        kernel,
        out_shape=jax.ShapeDtypeStruct((B, D), output.dtype),
        grid_spec=pltpu.PrefetchScalarGridSpec(
            num_scalar_prefetch=1,                 # ends -> SMEM (drives index_map)
            grid=(nb, bt),
            in_specs=in_specs,
            out_specs=pl.BlockSpec((bt, D), lambda i, r, e_ref: (i, 0)),
        ),
        compiler_params=pltpu.CompilerParams(
            dimension_semantics=("parallel", "arbitrary"),
            vmem_limit_bytes=32 * 1024 * 1024),
        cost_estimate=pl.CostEstimate(
            flops=B * D,
            transcendentals=0,
            bytes_accessed=n_in * B * tb * D * itemsize + B * D * itemsize
                           + b_pad * 4),
    )(ends_i, *inputs)


def get_pooled_output(output, starts, ends, *, pooling='max',
                      dim_hidden, bidirectional, max_tile_t=None):
    """Pallas equivalent of RNNModel.get_pooled_output.

    output: f32[B, T, D]   (D = n_directions * dim_hidden)
    starts, ends: i32[B]   (segment bounds pos[-2], pos[-1] per batch element)
    returns: f32[B, D]
    """
    if pooling in ('max', 'mean'):
        return _pooled_reduce(output, starts, ends, pooling, max_tile_t)
    if pooling == 'last':
        return _pooled_last(output, ends, dim_hidden, bidirectional)
    raise ValueError(f"Pooling method '{pooling}' is not supported")


def _ref_pooled(output, starts, ends, pooling, dim_hidden, bidirectional):
    """NumPy reference mirroring the PyTorch get_pooled_output."""
    output = np.asarray(output)
    starts = np.asarray(starts)
    ends = np.asarray(ends)
    rows = []
    for i in range(output.shape[0]):
        s, e = int(starts[i]), int(ends[i])
        if pooling == 'max':
            rows.append(output[i, s:e].max(axis=0) if e != s
                        else np.zeros(output.shape[2], output.dtype))
        elif pooling == 'mean':
            rows.append(output[i, s:e].mean(axis=0) if e != s
                        else np.zeros(output.shape[2], output.dtype))
        else:  # 'last'  (e-1 == -1 wraps, same as torch)
            if bidirectional:
                rows.append(np.concatenate(
                    [output[i, e - 1, :dim_hidden], output[i, 0, dim_hidden:]]))
            else:
                rows.append(output[i, e - 1])
    return np.stack(rows, axis=0)


if __name__ == "__main__":
    ok = True
    key = jax.random.PRNGKey(0)
    kA, kB, kC = jax.random.split(key, 3)

    # Config A: bidirectional, B=4, T=16, D=64; single time tile, boundary batch tile.
    HA = 32
    outA = jax.random.normal(kA, (4, 16, 2 * HA), dtype=jnp.float32)
    sA = jnp.array([0, 3, 5, 7], dtype=jnp.int32)
    eA = jnp.array([16, 3, 12, 8], dtype=jnp.int32)

    # Config B: unidirectional, B=5 (boundary batch tile, no full-tensor pad), T=16;
    # max_tile_t=8 forces a 2-step time-tiled accumulation; end==0 exercises the
    # torch output[i, -1] wrap for 'last' and an empty segment for max/mean.
    HB = 32
    outB = jax.random.normal(kB, (5, 16, HB), dtype=jnp.float32)
    sB = jnp.array([0, 3, 5, 0, 2], dtype=jnp.int32)
    eB = jnp.array([16, 3, 12, 0, 9], dtype=jnp.int32)

    # Config C: bidirectional with D=256, B=2 -> exercises the feature-dim split
    # (two 128-wide "parallel" blocks) used when there is a single batch tile.
    HC = 128
    outC = jax.random.normal(kC, (2, 8, 2 * HC), dtype=jnp.float32)
    sC = jnp.array([1, 0], dtype=jnp.int32)
    eC = jnp.array([8, 5], dtype=jnp.int32)

    cases = [
        ("A", outA, sA, eA, HA, True, None),
        ("B", outB, sB, eB, HB, False, 8),
        ("C", outC, sC, eC, HC, True, None),
    ]
    for name, out, s, e, h, bidir, mtt in cases:
        for pooling in ('max', 'mean', 'last'):
            got = get_pooled_output(out, s, e, pooling=pooling, dim_hidden=h,
                                    bidirectional=bidir, max_tile_t=mtt)
            got = np.asarray(jax.block_until_ready(got))
            ref = _ref_pooled(out, s, e, pooling, h, bidir)
            if not np.allclose(got, ref, atol=1e-5, rtol=1e-5):
                ok = False
                print(f"MISMATCH config={name} pooling={pooling}: "
                      f"max abs err {np.abs(got - ref).max()}")

    if ok:
        print("KERNEL_OK")
</pallas_src>

<mosaic_0001>
module attributes {stable_mosaic.version = 11 : i64} {
  func.func @_reduce_pool_kernel(%arg0: i32, %arg1: i32, %arg2: i32, %arg3: memref<1xi32, #tpu.memory_space<smem>>, %arg4: memref<1xi32, #tpu.memory_space<smem>>, %arg5: memref<8x1xi32, #tpu.memory_space<vmem>>, %arg6: memref<8x1xi32, #tpu.memory_space<vmem>>, %arg7: memref<8x16x64xf32, #tpu.memory_space<vmem>>, %arg8: memref<8x64xf32, #tpu.memory_space<vmem>>, %arg9: memref<8x64xf32, #tpu.memory_space<vmem>>) attributes {dimension_semantics = [#tpu.dimension_semantics<parallel>, #tpu.dimension_semantics<parallel>, #tpu.dimension_semantics<arbitrary>], iteration_bounds = array<i64: 1, 1, 1>, scalar_prefetch = 2 : i64, scratch_operands = 1 : i64, tpu.core_type = #tpu.core_type<tc>, window_params = [{transform_indices = @transform_0, window_bounds = array<i64: 8, 1>}, {transform_indices = @transform_1, window_bounds = array<i64: 8, 1>}, {transform_indices = @transform_2, window_bounds = array<i64: 8, 16, 64>}, {transform_indices = @transform_3, window_bounds = array<i64: 8, 64>}]} {
    %c0_i32 = arith.constant 0 : i32
    %0 = arith.cmpi eq, %arg2, %c0_i32 : i32
    %1 = arith.extui %0 : i1 to i32
    %c0_i32_0 = arith.constant 0 : i32
    %2 = arith.cmpi ne, %1, %c0_i32_0 : i32
    scf.if %2 {
      %cst = arith.constant 0xFF800000 : f32
      %11 = vector.broadcast %cst : f32 to vector<8x64xf32>
      %c0 = arith.constant 0 : index
      %c0_4 = arith.constant 0 : index
      %12 = vector.load %arg9[%c0, %c0_4] : memref<8x64xf32, #tpu.memory_space<vmem>>, vector<8x64xf32>
      tpu.vector_store %arg9[%c0, %c0_4], %11 {strides = array<i32>} : memref<8x64xf32, #tpu.memory_space<vmem>>, vector<8x64xf32>,
    } else {
    }
    %3 = arith.index_cast %arg0 : i32 to index
    %4 = memref.load %arg4[%3] : memref<1xi32, #tpu.memory_space<smem>>
    %5 = arith.cmpi slt, %arg2, %4 : i32
    %6 = arith.extui %5 : i1 to i32
    %c0_i32_1 = arith.constant 0 : i32
    %7 = arith.cmpi ne, %6, %c0_i32_1 : i32
    scf.if %7 {
      %c0 = arith.constant 0 : index
      %c0_4 = arith.constant 0 : index
      %11 = vector.load %arg5[%c0, %c0_4] : memref<8x1xi32, #tpu.memory_space<vmem>>, vector<8x1xi32>
      %c0_5 = arith.constant 0 : index
      %c0_6 = arith.constant 0 : index
      %12 = vector.load %arg6[%c0_5, %c0_6] : memref<8x1xi32, #tpu.memory_space<vmem>>, vector<8x1xi32>
      %c0_7 = arith.constant 0 : index
      %c0_8 = arith.constant 0 : index
      %c0_9 = arith.constant 0 : index
      %13 = vector.load %arg7[%c0_7, %c0_8, %c0_9] : memref<8x16x64xf32, #tpu.memory_space<vmem>>, vector<8x16x64xf32>
      %14 = arith.index_cast %arg0 : i32 to index
      %15 = memref.load %arg3[%14] : memref<1xi32, #tpu.memory_space<smem>>
      %16 = arith.addi %15, %arg2 : i32
      %c16_i32 = arith.constant 16 : i32
      %17 = arith.muli %16, %c16_i32 : i32
      %18 = tpu.iota {dimensions = array<i32: 1>} : vector<8x16x1xi32>
      %19 = vector.broadcast %17 : i32 to vector<8x16x1xi32>
      %20 = arith.addi %19, %18 : vector<8x16x1xi32>
      %21 = vector.shape_cast %11 : vector<8x1xi32> to vector<8x1x1xi32>
      %22 = vector.broadcast %21 : vector<8x1x1xi32> to vector<8x16x1xi32>
      %23 = arith.cmpi sge, %20, %22 : vector<8x16x1xi32>
      %24 = vector.shape_cast %12 : vector<8x1xi32> to vector<8x1x1xi32>
      %25 = vector.broadcast %24 : vector<8x1x1xi32> to vector<8x16x1xi32>
      %26 = arith.cmpi slt, %20, %25 : vector<8x16x1xi32>
      %27 = arith.andi %23, %26 : vector<8x16x1xi1>
      %cst = arith.constant 0xFF800000 : f32
      %28 = vector.shape_cast %27 : vector<8x16x1xi1> to vector<8x16x1xi1>
      %29 = vector.broadcast %28 : vector<8x16x1xi1> to vector<8x16x64xi1>
      %30 = vector.broadcast %cst : f32 to vector<8x16x64xf32>
      %31 = arith.select %29, %13, %30 : vector<8x16x64xi1>, vector<8x16x64xf32>
      %cst_10 = arith.constant dense<0xFF800000> : vector<8x64xf32>
      %32 = vector.multi_reduction <maximumf>, %31, %cst_10 [1] : vector<8x16x64xf32> to vector<8x64xf32>
      %c0_11 = arith.constant 0 : index
      %c0_12 = arith.constant 0 : index
      %33 = vector.load %arg9[%c0_11, %c0_12] : memref<8x64xf32, #tpu.memory_space<vmem>>, vector<8x64xf32>
      %34 = arith.maximumf %33, %32 : vector<8x64xf32>
      %c0_13 = arith.constant 0 : index
      %c0_14 = arith.constant 0 : index
      %35 = vector.load %arg9[%c0_13, %c0_14] : memref<8x64xf32, #tpu.memory_space<vmem>>, vector<8x64xf32>
      tpu.vector_store %arg9[%c0_13, %c0_14], %34 {strides = array<i32>} : memref<8x64xf32, #tpu.memory_space<vmem>>, vector<8x64xf32>,
    } else {
    }
    %c0_i32_2 = arith.constant 0 : i32
    %8 = arith.cmpi eq, %arg2, %c0_i32_2 : i32
    %9 = arith.extui %8 : i1 to i32
    %c0_i32_3 = arith.constant 0 : i32
    %10 = arith.cmpi ne, %9, %c0_i32_3 : i32
    scf.if %10 {
      %c0 = arith.constant 0 : index
      %c0_4 = arith.constant 0 : index
      %11 = vector.load %arg5[%c0, %c0_4] : memref<8x1xi32, #tpu.memory_space<vmem>>, vector<8x1xi32>
      %c0_5 = arith.constant 0 : index
      %c0_6 = arith.constant 0 : index
      %12 = vector.load %arg6[%c0_5, %c0_6] : memref<8x1xi32, #tpu.memory_space<vmem>>, vector<8x1xi32>
      %13 = arith.cmpi sgt, %12, %11 : vector<8x1xi32>
      %c0_7 = arith.constant 0 : index
      %c0_8 = arith.constant 0 : index
      %14 = vector.load %arg9[%c0_7, %c0_8] : memref<8x64xf32, #tpu.memory_space<vmem>>, vector<8x64xf32>
      %cst = arith.constant 0.000000e+00 : f32
      %15 = vector.shape_cast %13 : vector<8x1xi1> to vector<8x1xi1>
      %16 = vector.broadcast %15 : vector<8x1xi1> to vector<8x64xi1>
      %17 = vector.broadcast %cst : f32 to vector<8x64xf32>
      %18 = arith.select %16, %14, %17 : vector<8x64xi1>, vector<8x64xf32>
      %c0_9 = arith.constant 0 : index
      %c0_10 = arith.constant 0 : index
      %19 = vector.load %arg8[%c0_9, %c0_10] : memref<8x64xf32, #tpu.memory_space<vmem>>, vector<8x64xf32>
      tpu.vector_store %arg8[%c0_9, %c0_10], %18 {strides = array<i32>} : memref<8x64xf32, #tpu.memory_space<vmem>>, vector<8x64xf32>,
    } else {
    }
    return
  }
  func.func @transform_0(%arg0: i32, %arg1: i32, %arg2: i32, %arg3: memref<1xi32, #tpu.memory_space<smem>>, %arg4: memref<1xi32, #tpu.memory_space<smem>>) -> (i32, i32) {
    %c0_i32 = arith.constant 0 : i32
    %c0_i32_0 = arith.constant 0 : i32
    return %arg0, %c0_i32 : i32, i32
  }
  func.func @transform_1(%arg0: i32, %arg1: i32, %arg2: i32, %arg3: memref<1xi32, #tpu.memory_space<smem>>, %arg4: memref<1xi32, #tpu.memory_space<smem>>) -> (i32, i32) {
    %c0_i32 = arith.constant 0 : i32
    %c0_i32_0 = arith.constant 0 : i32
    return %arg0, %c0_i32 : i32, i32
  }
  func.func @transform_2(%arg0: i32, %arg1: i32, %arg2: i32, %arg3: memref<1xi32, #tpu.memory_space<smem>>, %arg4: memref<1xi32, #tpu.memory_space<smem>>) -> (i32, i32, i32) {
    %0 = arith.index_cast %arg0 : i32 to index
    %1 = memref.load %arg3[%0] : memref<1xi32, #tpu.memory_space<smem>>
    %2 = arith.index_cast %arg0 : i32 to index
    %3 = memref.load %arg4[%2] : memref<1xi32, #tpu.memory_space<smem>>
    %c1_i32 = arith.constant 1 : i32
    %4 = arith.subi %3, %c1_i32 : i32
    %5 = arith.minsi %arg2, %4 : i32
    %6 = arith.addi %1, %5 : i32
    %c0_i32 = arith.constant 0 : i32
    return %arg0, %6, %arg1 : i32, i32, i32
  }
  func.func @transform_3(%arg0: i32, %arg1: i32, %arg2: i32, %arg3: memref<1xi32, #tpu.memory_space<smem>>, %arg4: memref<1xi32, #tpu.memory_space<smem>>) -> (i32, i32) {
    %c0_i32 = arith.constant 0 : i32
    return %arg0, %arg1 : i32, i32
  }
}

</mosaic_0001>

<llo_original>
// kernel: tpu_custom_call.1
$region0: #{tpu_custom_call.1}
  #allocation0 [shape = 'u32[]', space=smem, size = 0x4, offset = 0x4, fixed_abs, tag = 'smem constant byte address 0x4 - core index']
  #allocation1 [shape = 'u32[144,128]{1,0:T(1,128)}', space=vmem, size = 0x12000, scoped, tag = 'internal scratch']
  #allocation2 [shape = 'f32[8,64]{1,0:T(8,128)}', space=vmem, size = 0x1000, scoped, tag = 'scratch operand']
  #allocation3 [shape = 's32[1]{0}', space=sflag, size = 0x4, scoped, tag = 'scoped memory for tpu_custom_call.1']
  #allocation4 [shape = 's32[1]{0:T(128)S(6)}', space=smem, size = 0x200, scoped, tag = 'prefetched SMEM operand 0']
  #allocation5 [shape = 's32[1]{0:T(128)S(6)}', space=smem, size = 0x200, scoped, tag = 'prefetched SMEM operand 1']
  %s0 = inlined_call_operand.<no memory space> [shape: s32[1], index: 0, kind: input, shape index: {}]
  %s1 = inlined_call_operand.<no memory space> [shape: s32[1], index: 1, kind: input, shape index: {}]
  %s2 = inlined_call_operand.vmem [shape: s32[8,1], index: 2, kind: input, shape index: {}]
  %s3 = inlined_call_operand.vmem [shape: s32[8,1], index: 3, kind: input, shape index: {}]
  %s4 = inlined_call_operand.hbm [shape: f32[4,16,64], index: 4, kind: input, shape index: {}]
  %s5 = inlined_call_operand.hbm [shape: f32[4,64], index: 5, kind: output, shape index: {}]
  %s6 = sld [smem:[#allocation0]]
  $region38: #{tpu_custom_call.1} parent=0
    _
  %s8 = ssub.s32 1, %s6
  %s9 = scalar_select 0, %s8, %s6
  %10 = sst [smem:[#allocation4]] %s0
  %11 = sst [smem:[#allocation5]] %s1
  $region1: #{tpu_custom_call.1} parent=0
    #allocation6 [shape = 'u8[65536]{0}', space=vmem, size = 0x10000, scoped, tag = 'input window, operand 4, single buffered']
    #allocation7 [shape = 's32[1]{0}', space=sflag, size = 0x4, scoped, tag = 'scoped memory for tpu_custom_call.1']
    #allocation8 [shape = 's32[1]{0}', space=sflag, size = 0x4, scoped, tag = 'scoped memory for tpu_custom_call.1']
    #allocation9 [shape = 'u8[4096]{0}', space=vmem, size = 0x1000, scoped, tag = 'output window, operand 0, single buffered']
    %12 = vsyncpa [#allocation7], 0
    %13 = vsyncpa [#allocation8], 0
    // Predicated region
    $region2: #{tpu_custom_call.1} parent=1 // pred_check
      _
    $region3: #{tpu_custom_call.1} parent=1 // pred_check_branch
      %15 = sbr.rel (0) target = $region5
    $region4: #{tpu_custom_call.1} parent=1 // pred_region
      _
    $region5: #{tpu_custom_call.1} parent=1 // pred_fallthru
      _
    // Predicated region
    $region6: #{tpu_custom_call.1} parent=1 // pred_check
      _
    $region7: #{tpu_custom_call.1} parent=1 // pred_check_branch
      %17 = sbr.rel (0) target = $region9
    $region8: #{tpu_custom_call.1} parent=1 // pred_region
      _
    $region9: #{tpu_custom_call.1} parent=1 // pred_fallthru
      _
    // Predicated region
    $region10: #{tpu_custom_call.1} parent=1 // pred_check
      _
    $region11: #{tpu_custom_call.1} parent=1 // pred_check_branch
      %19 = sbr.rel (0) target = $region13
    $region12: #{tpu_custom_call.1} parent=1 // pred_region
      %s20 = sld [smem:[#allocation4]]
      %s21 = sld [smem:[#allocation5]]
      %s22 = ssub.s32 %s21, 1
      %p23 = scmp.lt.s32.totalorder 0, %s22
      %s24 = scalar_select %p23, 0, %s22
      %s25 = sadd.s32 %s20, %s24
      %s26 = smul.u32 2, %s25
      %s28 = ssub.s32 2048, 1024
      %29 = vsyncadd [#allocation7], %s28
      %s30 = smul.addr %s26, 128
      %s31 = scalar_lea.hbm %s4, %s30
      %s32 = sshll.u32 [#allocation6], 4
      %s33 = int_to_ptr.vmem [resolvable:$true] %s32
      %38 = dma.hbm_to_vmem [thread:$0]  %s31, 1024, %s33, [#allocation7], 128, 128, 8
    $region13: #{tpu_custom_call.1} parent=1 // pred_fallthru
      _
    // Predicated region
    $region14: #{tpu_custom_call.1} parent=1 // pred_check
      _
    $region15: #{tpu_custom_call.1} parent=1 // pred_check_branch
      %40 = sbr.rel (0) target = $region17
    $region16: #{tpu_custom_call.1} parent=1 // pred_region
      %41 = dma.done [#allocation7], 2048
    $region17: #{tpu_custom_call.1} parent=1 // pred_fallthru
      _
    %s42 = sld [smem:[#allocation4]]
    %s43 = sld [smem:[#allocation5]]
    %s44 = ssub.s32 %s43, 1
    %p45 = scmp.lt.s32.totalorder 0, %s44
    %s46 = scalar_select %p45, 0, %s44
    %s47 = sadd.s32 %s42, %s46
    %s48 = smul.u32 2, %s47
    %p49 = scmp.eq.s32.totalorder 0, 0
    // Predicated region
    $region18: #{tpu_custom_call.1} parent=1 // pred_check
      %p50 = pneg %p49
    $region19: #{tpu_custom_call.1} parent=1 // pred_check_branch
      %52 = sbr.rel (%p50) target = $region21
    $region20: #{tpu_custom_call.1} parent=1 // pred_region
      %vm53 = vcmask 523264
      %54 = vst.msk [vmem:[#allocation2] sm:$0xff] %vm53, -inf
    $region21: #{tpu_custom_call.1} parent=1 // pred_fallthru
      _
    %s55 = sld [smem:[#allocation5]]
    %p56 = scmp.lt.s32.totalorder 0, %s55
    // Predicated region
    $region22: #{tpu_custom_call.1} parent=1 // pred_check
      %p57 = pneg %p56
    $region23: #{tpu_custom_call.1} parent=1 // pred_check_branch
      %59 = sbr.rel (%p57) target = $region25
    $region24: #{tpu_custom_call.1} parent=1 // pred_region
      %v60 = vld [vmem:[%s2] sm:$0xff]
      %v61 = vld [vmem:[%s3] sm:$0xff]
      %v62 = vld [vmem:[#allocation6] sm:$0xff]
      %v63 = vld [vmem:[#allocation6 + $0x8] sm:$0xff]
      %v64 = vld [vmem:[#allocation6 + $0x10] sm:$0xff]
      %v65 = vld [vmem:[#allocation6 + $0x18] sm:$0xff]
      %v66 = vld [vmem:[#allocation6 + $0x20] sm:$0xff]
      %v67 = vld [vmem:[#allocation6 + $0x28] sm:$0xff]
      %v68 = vld [vmem:[#allocation6 + $0x30] sm:$0xff]
      %v69 = vld [vmem:[#allocation6 + $0x38] sm:$0xff]
      %v70 = vld [vmem:[#allocation6 + $0x40] sm:$0xff]
      %v71 = vld [vmem:[#allocation6 + $0x48] sm:$0xff]
      %v72 = vld [vmem:[#allocation6 + $0x50] sm:$0xff]
      %v73 = vld [vmem:[#allocation6 + $0x58] sm:$0xff]
      %v74 = vld [vmem:[#allocation6 + $0x60] sm:$0xff]
      %v75 = vld [vmem:[#allocation6 + $0x68] sm:$0xff]
      %v76 = vld [vmem:[#allocation6 + $0x70] sm:$0xff]
      %v77 = vld [vmem:[#allocation6 + $0x78] sm:$0xff]
      %s78 = sld [smem:[#allocation4]]
      %s79 = sadd.s32 %s78, 0
      %s80 = smul.u32 %s79, 16
      %v81 = vlaneseq
      %v82 = vshrl.u32 %v81, 7
      %v83 = vadd.s32 %v82, 8
      %v84 = vstv %s80
      %v85 = vadd.s32 %v84, %v82
      %v86 = vadd.s32 %v84, %v83
      %v87 = vcombine.high %v60, %v60
      %v89 = vunpack.c.l.s4 1966171168
      %v90 = vunpack.c.0.s8 %v89
      %v91 = vlaneseq
      %v92 = vshrl.u32 %v91, 7
      %v93 = vsub.s32 %v90, %v92
      %v94 = vrot.slane %v60, %v93
      %v96 = vunpack.c.l.s4 1966171168
      %v97 = vunpack.c.0.s8 %v96
      %v98 = vlaneseq
      %v99 = vshrl.u32 %v98, 7
      %v100 = vsub.s32 %v97, %v99
      %v101 = vrot.slane %v87, %v100
      %v102 = vcombine.high %v94, %v94
      %v103 = vcombine.high %v101, %v101
      %v105 = vunpack.c.l.s4 1966171168
      %v106 = vunpack.c.0.s8 %v105
      %v107 = vlaneseq
      %v108 = vshrl.u32 %v107, 7
      %v109 = vsub.s32 %v106, %v108
      %v110 = vrot.slane %v94, %v109
      %v112 = vunpack.c.l.s4 1966171168
      %v113 = vunpack.c.0.s8 %v112
      %v114 = vlaneseq
      %v115 = vshrl.u32 %v114, 7
      %v116 = vsub.s32 %v113, %v115
      %v117 = vrot.slane %v101, %v116
      %v119 = vunpack.c.l.s4 1966171168
      %v120 = vunpack.c.0.s8 %v119
      %v121 = vlaneseq
      %v122 = vshrl.u32 %v121, 7
      %v123 = vsub.s32 %v120, %v122
      %v124 = vrot.slane %v102, %v123
      %v126 = vunpack.c.l.s4 1966171168
      %v127 = vunpack.c.0.s8 %v126
      %v128 = vlaneseq
      %v129 = vshrl.u32 %v128, 7
      %v130 = vsub.s32 %v127, %v129
      %v131 = vrot.slane %v103, %v130
      %v132 = vcombine.high %v110, %v110
      %v133 = vcombine.high %v117, %v117
      %v134 = vcombine.high %v124, %v124
      %v135 = vcombine.high %v131, %v131
      %v136 = vlaneseq
      %v137 = vshrl.u32 %v136, 7
      %v138 = vsub.s32 0, %v137
      %v139 = vrot.slane %v110, %v138
      %v140 = vlaneseq
      %v141 = vshrl.u32 %v140, 7
      %v142 = vsub.s32 0, %v141
      %v143 = vrot.slane %v124, %v142
      %v144 = vlaneseq
      %v145 = vshrl.u32 %v144, 7
      %v146 = vsub.s32 0, %v145
      %v147 = vrot.slane %v132, %v146
      %v148 = vlaneseq
      %v149 = vshrl.u32 %v148, 7
      %v150 = vsub.s32 0, %v149
      %v151 = vrot.slane %v134, %v150
      %v152 = vlaneseq
      %v153 = vshrl.u32 %v152, 7
      %v154 = vsub.s32 0, %v153
      %v155 = vrot.slane %v117, %v154
      %v156 = vlaneseq
      %v157 = vshrl.u32 %v156, 7
      %v158 = vsub.s32 0, %v157
      %v159 = vrot.slane %v131, %v158
      %v160 = vlaneseq
      %v161 = vshrl.u32 %v160, 7
      %v162 = vsub.s32 0, %v161
      %v163 = vrot.slane %v133, %v162
      %v164 = vlaneseq
      %v165 = vshrl.u32 %v164, 7
      %v166 = vsub.s32 0, %v165
      %v167 = vrot.slane %v135, %v166
      %vm168 = vcmp.ge.s32.totalorder %v85, %v139
      %vm169 = vcmp.ge.s32.totalorder %v86, %v139
      %vm170 = vcmp.ge.s32.totalorder %v85, %v143
      %vm171 = vcmp.ge.s32.totalorder %v86, %v143
      %vm172 = vcmp.ge.s32.totalorder %v85, %v147
      %vm173 = vcmp.ge.s32.totalorder %v86, %v147
      %vm174 = vcmp.ge.s32.totalorder %v85, %v151
      %vm175 = vcmp.ge.s32.totalorder %v86, %v151
      %vm176 = vcmp.ge.s32.totalorder %v85, %v155
      %vm177 = vcmp.ge.s32.totalorder %v86, %v155
      %vm178 = vcmp.ge.s32.totalorder %v85, %v159
      %vm179 = vcmp.ge.s32.totalorder %v86, %v159
      %vm180 = vcmp.ge.s32.totalorder %v85, %v163
      %vm181 = vcmp.ge.s32.totalorder %v86, %v163
      %vm182 = vcmp.ge.s32.totalorder %v85, %v167
      %vm183 = vcmp.ge.s32.totalorder %v86, %v167
      %v184 = vcombine.high %v61, %v61
      %v186 = vunpack.c.l.s4 1966171168
      %v187 = vunpack.c.0.s8 %v186
      %v188 = vlaneseq
      %v189 = vshrl.u32 %v188, 7
      %v190 = vsub.s32 %v187, %v189
      %v191 = vrot.slane %v61, %v190
      %v193 = vunpack.c.l.s4 1966171168
      %v194 = vunpack.c.0.s8 %v193
      %v195 = vlaneseq
      %v196 = vshrl.u32 %v195, 7
      %v197 = vsub.s32 %v194, %v196
      %v198 = vrot.slane %v184, %v197
      %v199 = vcombine.high %v191, %v191
      %v200 = vcombine.high %v198, %v198
      %v202 = vunpack.c.l.s4 1966171168
      %v203 = vunpack.c.0.s8 %v202
      %v204 = vlaneseq
      %v205 = vshrl.u32 %v204, 7
      %v206 = vsub.s32 %v203, %v205
      %v207 = vrot.slane %v191, %v206
      %v209 = vunpack.c.l.s4 1966171168
      %v210 = vunpack.c.0.s8 %v209
      %v211 = vlaneseq
      %v212 = vshrl.u32 %v211, 7
      %v213 = vsub.s32 %v210, %v212
      %v214 = vrot.slane %v198, %v213
      %v216 = vunpack.c.l.s4 1966171168
      %v217 = vunpack.c.0.s8 %v216
      %v218 = vlaneseq
      %v219 = vshrl.u32 %v218, 7
      %v220 = vsub.s32 %v217, %v219
      %v221 = vrot.slane %v199, %v220
      %v223 = vunpack.c.l.s4 1966171168
      %v224 = vunpack.c.0.s8 %v223
      %v225 = vlaneseq
      %v226 = vshrl.u32 %v225, 7
      %v227 = vsub.s32 %v224, %v226
      %v228 = vrot.slane %v200, %v227
      %v229 = vcombine.high %v207, %v207
      %v230 = vcombine.high %v214, %v214
      %v231 = vcombine.high %v221, %v221
      %v232 = vcombine.high %v228, %v228
      %v233 = vlaneseq
      %v234 = vshrl.u32 %v233, 7
      %v235 = vsub.s32 0, %v234
      %v236 = vrot.slane %v207, %v235
      %v237 = vlaneseq
      %v238 = vshrl.u32 %v237, 7
      %v239 = vsub.s32 0, %v238
      %v240 = vrot.slane %v221, %v239
      %v241 = vlaneseq
      %v242 = vshrl.u32 %v241, 7
      %v243 = vsub.s32 0, %v242
      %v244 = vrot.slane %v229, %v243
      %v245 = vlaneseq
      %v246 = vshrl.u32 %v245, 7
      %v247 = vsub.s32 0, %v246
      %v248 = vrot.slane %v231, %v247
      %v249 = vlaneseq
      %v250 = vshrl.u32 %v249, 7
      %v251 = vsub.s32 0, %v250
      %v252 = vrot.slane %v214, %v251
      %v253 = vlaneseq
      %v254 = vshrl.u32 %v253, 7
      %v255 = vsub.s32 0, %v254
      %v256 = vrot.slane %v228, %v255
      %v257 = vlaneseq
      %v258 = vshrl.u32 %v257, 7
      %v259 = vsub.s32 0, %v258
      %v260 = vrot.slane %v230, %v259
      %v261 = vlaneseq
      %v262 = vshrl.u32 %v261, 7
      %v263 = vsub.s32 0, %v262
      %v264 = vrot.slane %v232, %v263
      %vm265 = vcmp.lt.s32.totalorder %v85, %v236
      %vm266 = vcmp.lt.s32.totalorder %v86, %v236
      %vm267 = vcmp.lt.s32.totalorder %v85, %v240
      %vm268 = vcmp.lt.s32.totalorder %v86, %v240
      %vm269 = vcmp.lt.s32.totalorder %v85, %v244
      %vm270 = vcmp.lt.s32.totalorder %v86, %v244
      %vm271 = vcmp.lt.s32.totalorder %v85, %v248
      %vm272 = vcmp.lt.s32.totalorder %v86, %v248
      %vm273 = vcmp.lt.s32.totalorder %v85, %v252
      %vm274 = vcmp.lt.s32.totalorder %v86, %v252
      %vm275 = vcmp.lt.s32.totalorder %v85, %v256
      %vm276 = vcmp.lt.s32.totalorder %v86, %v256
      %vm277 = vcmp.lt.s32.totalorder %v85, %v260
      %vm278 = vcmp.lt.s32.totalorder %v86, %v260
      %vm279 = vcmp.lt.s32.totalorder %v85, %v264
      %vm280 = vcmp.lt.s32.totalorder %v86, %v264
      %vm281 = vmand %vm168, %vm265
      %vm282 = vmand %vm169, %vm266
      %vm283 = vmand %vm170, %vm267
      %vm284 = vmand %vm171, %vm268
      %vm285 = vmand %vm172, %vm269
      %vm286 = vmand %vm173, %vm270
      %vm287 = vmand %vm174, %vm271
      %vm288 = vmand %vm175, %vm272
      %vm289 = vmand %vm176, %vm273
      %vm290 = vmand %vm177, %vm274
      %vm291 = vmand %vm178, %vm275
      %vm292 = vmand %vm179, %vm276
      %vm293 = vmand %vm180, %vm277
      %vm294 = vmand %vm181, %vm278
      %vm295 = vmand %vm182, %vm279
      %vm296 = vmand %vm183, %vm280
      %v297 = vsel %vm281, 1, 0
      %v298 = vsel %vm282, 1, 0
      %v299 = vsel %vm283, 1, 0
      %v300 = vsel %vm284, 1, 0
      %v301 = vsel %vm285, 1, 0
      %v302 = vsel %vm286, 1, 0
      %v303 = vsel %vm287, 1, 0
      %v304 = vsel %vm288, 1, 0
      %v305 = vsel %vm289, 1, 0
      %v306 = vsel %vm290, 1, 0
      %v307 = vsel %vm291, 1, 0
      %v308 = vsel %vm292, 1, 0
      %v309 = vsel %vm293, 1, 0
      %v310 = vsel %vm294, 1, 0
      %v311 = vsel %vm295, 1, 0
      %v312 = vsel %vm296, 1, 0
      %313 = vset.pattern.permute.xlu0 0
      %314 = vperm.xlu0 %313, %v297
      %v315 = vpop.permute.xlu0 %314
      %316 = vset.pattern.permute.xlu0 0
      %317 = vperm.xlu0 %316, %v298
      %v318 = vpop.permute.xlu0 %317
      %319 = vset.pattern.permute.xlu0 0
      %320 = vperm.xlu0 %319, %v299
      %v321 = vpop.permute.xlu0 %320
      %322 = vset.pattern.permute.xlu0 0
      %323 = vperm.xlu0 %322, %v300
      %v324 = vpop.permute.xlu0 %323
      %325 = vset.pattern.permute.xlu0 0
      %326 = vperm.xlu0 %325, %v301
      %v327 = vpop.permute.xlu0 %326
      %328 = vset.pattern.permute.xlu0 0
      %329 = vperm.xlu0 %328, %v302
      %v330 = vpop.permute.xlu0 %329
      %331 = vset.pattern.permute.xlu0 0
      %332 = vperm.xlu0 %331, %v303
      %v333 = vpop.permute.xlu0 %332
      %334 = vset.pattern.permute.xlu0 0
      %335 = vperm.xlu0 %334, %v304
      %v336 = vpop.permute.xlu0 %335
      %337 = vset.pattern.permute.xlu0 0
      %338 = vperm.xlu0 %337, %v305
      %v339 = vpop.permute.xlu0 %338
      %340 = vset.pattern.permute.xlu0 0
      %341 = vperm.xlu0 %340, %v306
      %v342 = vpop.permute.xlu0 %341
      %343 = vset.pattern.permute.xlu0 0
      %344 = vperm.xlu0 %343, %v307
      %v345 = vpop.permute.xlu0 %344
      %346 = vset.pattern.permute.xlu0 0
      %347 = vperm.xlu0 %346, %v308
      %v348 = vpop.permute.xlu0 %347
      %349 = vset.pattern.permute.xlu0 0
      %350 = vperm.xlu0 %349, %v309
      %v351 = vpop.permute.xlu0 %350
      %352 = vset.pattern.permute.xlu0 0
      %353 = vperm.xlu0 %352, %v310
      %v354 = vpop.permute.xlu0 %353
      %355 = vset.pattern.permute.xlu0 0
      %356 = vperm.xlu0 %355, %v311
      %v357 = vpop.permute.xlu0 %356
      %358 = vset.pattern.permute.xlu0 0
      %359 = vperm.xlu0 %358, %v312
      %v360 = vpop.permute.xlu0 %359
      %vm361 = vcmp.eq.s32.totalorder %v315, 1
      %vm362 = vcmp.eq.s32.totalorder %v318, 1
      %vm363 = vcmp.eq.s32.totalorder %v321, 1
      %vm364 = vcmp.eq.s32.totalorder %v324, 1
      %vm365 = vcmp.eq.s32.totalorder %v327, 1
      %vm366 = vcmp.eq.s32.totalorder %v330, 1
      %vm367 = vcmp.eq.s32.totalorder %v333, 1
      %vm368 = vcmp.eq.s32.totalorder %v336, 1
      %vm369 = vcmp.eq.s32.totalorder %v339, 1
      %vm370 = vcmp.eq.s32.totalorder %v342, 1
      %vm371 = vcmp.eq.s32.totalorder %v345, 1
      %vm372 = vcmp.eq.s32.totalorder %v348, 1
      %vm373 = vcmp.eq.s32.totalorder %v351, 1
      %vm374 = vcmp.eq.s32.totalorder %v354, 1
      %vm375 = vcmp.eq.s32.totalorder %v357, 1
      %vm376 = vcmp.eq.s32.totalorder %v360, 1
      %v377 = vsel %vm361, %v62, -inf
      %v378 = vsel %vm362, %v63, -inf
      %v379 = vsel %vm363, %v64, -inf
      %v380 = vsel %vm364, %v65, -inf
      %v381 = vsel %vm365, %v66, -inf
      %v382 = vsel %vm366, %v67, -inf
      %v383 = vsel %vm367, %v68, -inf
      %v384 = vsel %vm368, %v69, -inf
      %v385 = vsel %vm369, %v70, -inf
      %v386 = vsel %vm370, %v71, -inf
      %v387 = vsel %vm371, %v72, -inf
      %v388 = vsel %vm372, %v73, -inf
      %v389 = vsel %vm373, %v74, -inf
      %v390 = vsel %vm374, %v75, -inf
      %v391 = vsel %vm375, %v76, -inf
      %v392 = vsel %vm376, %v77, -inf
      %vm393 = vcmask 523264
      %v394 = vsel %vm393, %v377, -inf
      %v395 = vsel %vm393, %v378, -inf
      %v396 = vmax.f32 %v394, %v395
      %v397 = vrot.slane %v396, 4
      %v398 = vmax.f32 %v396, %v397
      %v399 = vrot.slane %v398, 2
      %v400 = vmax.f32 %v398, %v399
      %v401 = vrot.slane %v400, 1
      %v402 = vmax.f32 %v400, %v401
      %v403 = vsel %vm393, %v379, -inf
      %v404 = vsel %vm393, %v380, -inf
      %v405 = vmax.f32 %v403, %v404
      %v406 = vrot.slane %v405, 4
      %v407 = vmax.f32 %v405, %v406
      %v408 = vrot.slane %v407, 2
      %v409 = vmax.f32 %v407, %v408
      %v410 = vrot.slane %v409, 1
      %v411 = vmax.f32 %v409, %v410
      %v412 = vsel %vm393, %v381, -inf
      %v413 = vsel %vm393, %v382, -inf
      %v414 = vmax.f32 %v412, %v413
      %v415 = vrot.slane %v414, 4
      %v416 = vmax.f32 %v414, %v415
      %v417 = vrot.slane %v416, 2
      %v418 = vmax.f32 %v416, %v417
      %v419 = vrot.slane %v418, 1
      %v420 = vmax.f32 %v418, %v419
      %v421 = vsel %vm393, %v383, -inf
      %v422 = vsel %vm393, %v384, -inf
      %v423 = vmax.f32 %v421, %v422
      %v424 = vrot.slane %v423, 4
      %v425 = vmax.f32 %v423, %v424
      %v426 = vrot.slane %v425, 2
      %v427 = vmax.f32 %v425, %v426
      %v428 = vrot.slane %v427, 1
      %v429 = vmax.f32 %v427, %v428
      %v430 = vsel %vm393, %v385, -inf
      %v431 = vsel %vm393, %v386, -inf
      %v432 = vmax.f32 %v430, %v431
      %v433 = vrot.slane %v432, 4
      %v434 = vmax.f32 %v432, %v433
      %v435 = vrot.slane %v434, 2
      %v436 = vmax.f32 %v434, %v435
      %v437 = vrot.slane %v436, 1
      %v438 = vmax.f32 %v436, %v437
      %v439 = vsel %vm393, %v387, -inf
      %v440 = vsel %vm393, %v388, -inf
      %v441 = vmax.f32 %v439, %v440
      %v442 = vrot.slane %v441, 4
      %v443 = vmax.f32 %v441, %v442
      %v444 = vrot.slane %v443, 2
      %v445 = vmax.f32 %v443, %v444
      %v446 = vrot.slane %v445, 1
      %v447 = vmax.f32 %v445, %v446
      %v448 = vsel %vm393, %v389, -inf
      %v449 = vsel %vm393, %v390, -inf
      %v450 = vmax.f32 %v448, %v449
      %v451 = vrot.slane %v450, 4
      %v452 = vmax.f32 %v450, %v451
      %v453 = vrot.slane %v452, 2
      %v454 = vmax.f32 %v452, %v453
      %v455 = vrot.slane %v454, 1
      %v456 = vmax.f32 %v454, %v455
      %v457 = vsel %vm393, %v391, -inf
      %v458 = vsel %vm393, %v392, -inf
      %v459 = vmax.f32 %v457, %v458
      %v460 = vrot.slane %v459, 4
      %v461 = vmax.f32 %v459, %v460
      %v462 = vrot.slane %v461, 2
      %v463 = vmax.f32 %v461, %v462
      %v464 = vrot.slane %v463, 1
      %v465 = vmax.f32 %v463, %v464
      %v466 = vld [vmem:[#allocation2] sm:$0xff]
      %vm475 = vcmask 1041409
      %v476 = vsel %vm475, %v411, %v402
      %vm477 = vcmask 1042434
      %v478 = vsel %vm477, %v420, %v476
      %vm479 = vcmask 1043459
      %v480 = vsel %vm479, %v429, %v478
      %vm481 = vcmask 1044484
      %v482 = vsel %vm481, %v438, %v480
      %vm483 = vcmask 1045509
      %v484 = vsel %vm483, %v447, %v482
      %vm485 = vcmask 1046534
      %v486 = vsel %vm485, %v456, %v484
      %vm487 = vcmask 1047559
      %v488 = vsel %vm487, %v465, %v486
      %v490 = vmax.f32 %v466, %v488
      %491 = vst.msk [vmem:[#allocation2] sm:$0xff] %vm393, %v490
    $region25: #{tpu_custom_call.1} parent=1 // pred_fallthru
      _
    // Predicated region
    $region26: #{tpu_custom_call.1} parent=1 // pred_check
      %p492 = pneg %p49
    $region27: #{tpu_custom_call.1} parent=1 // pred_check_branch
      %494 = sbr.rel (%p492) target = $region29
    $region28: #{tpu_custom_call.1} parent=1 // pred_region
      %v495 = vld [vmem:[%s2] sm:$0xff]
      %v496 = vld [vmem:[%s3] sm:$0xff]
      %vm497 = vcmp.gt.s32.totalorder %v496, %v495
      %v498 = vld [vmem:[#allocation2] sm:$0xff]
      %v499 = vsel %vm497, 1, 0
      %500 = vset.pattern.permute.xlu0 0
      %501 = vperm.xlu0 %500, %v499
      %v502 = vpop.permute.xlu0 %501
      %vm503 = vcmp.eq.s32.totalorder %v502, 1
      %v504 = vsel %vm503, %v498, 0.0
      %vm505 = vcmask 523264
      %506 = vst.msk [vmem:[#allocation9] sm:$0xff] %vm505, %v504
    $region29: #{tpu_custom_call.1} parent=1 // pred_fallthru
      _
    // Predicated region
    $region30: #{tpu_custom_call.1} parent=1 // pred_check
      _
    $region31: #{tpu_custom_call.1} parent=1 // pred_check_branch
      %508 = sbr.rel (0) target = $region33
    $region32: #{tpu_custom_call.1} parent=1 // pred_region
      %s510 = ssub.s32 128, 64
      %511 = vsyncadd [#allocation8], %s510
      %s512 = sshll.u32 [#allocation9], 4
      %s513 = int_to_ptr.vmem [resolvable:$true] %s512
      %518 = dma.vmem_to_hbm [thread:$0]  %s513, 64, %s5, [#allocation8], 64, 64, 4
    $region33: #{tpu_custom_call.1} parent=1 // pred_fallthru
      _
    // Predicated region
    $region34: #{tpu_custom_call.1} parent=1 // pred_check
      _
    $region35: #{tpu_custom_call.1} parent=1 // pred_check_branch
      %520 = sbr.rel (0) target = $region37
    $region36: #{tpu_custom_call.1} parent=1 // pred_region
      %521 = dma.done [#allocation8], 128
    $region37: #{tpu_custom_call.1} parent=1 // pred_fallthru
      _
    %522 = vsyncpa [#allocation7], 1
    %523 = vsyncpa [#allocation8], 1

</llo_original>
